<compile_context>
chip_gen: v7x
topology: tpu7x:2x2x1
jax: 0.10.0
libtpu: 0.0.40
codegen_flags: <defaults>
</compile_context>

<pallas_src>
import functools

import jax
import jax.numpy as jnp
from jax.experimental import pallas as pl
from jax.experimental.pallas import tpu as pltpu

LANE = 128
NEG_INF = -1e9


def _round_up(n, m):
    return ((n + m - 1) // m) * m


def _pad_to(a, shape):
    return jnp.pad(a, [(0, t - s) for s, t in zip(a.shape, shape)])


def _nbytes(a):
    return int(a.size) * a.dtype.itemsize


# ----------------------------------------------------------------------------
# Generic row-tiled linear kernel:  y = act(x @ w + b)
# ----------------------------------------------------------------------------
def _linear_kernel(x_ref, w_ref, b_ref, o_ref, *, activation):
    y = jnp.dot(x_ref[...], w_ref[...], preferred_element_type=jnp.float32)
    y = y + b_ref[...]
    if activation == "tanh":
        y = jnp.tanh(y)
    elif activation == "relu":
        y = jnp.maximum(y, 0.0)
    o_ref[...] = y


def pallas_linear(x, w, b, activation=None, block_rows=512):
    M, K = x.shape
    N = w.shape[1]
    # 512-row tiles (mem-bound sweet spot); ragged last block is masked by Pallas.
    tm = M if M <= block_rows else block_rows
    return pl.pallas_call(
        functools.partial(_linear_kernel, activation=activation),
        grid=(pl.cdiv(M, tm),),
        out_shape=jax.ShapeDtypeStruct((M, N), jnp.float32),
        in_specs=[
            pl.BlockSpec((tm, K), lambda i: (i, 0)),
            pl.BlockSpec((K, N), lambda i: (0, 0)),
            pl.BlockSpec((1, N), lambda i: (0, 0)),
        ],
        out_specs=pl.BlockSpec((tm, N), lambda i: (i, 0)),
        compiler_params=pltpu.CompilerParams(dimension_semantics=("parallel",)),
    )(x, w, b.reshape(1, N))


# ----------------------------------------------------------------------------
# Fused decoder kernel: grid = (batch blocks, timesteps).
# ----------------------------------------------------------------------------
def _decoder_kernel(tgt_ref, msk_ref, emb_src_ref,
                    enc_ref, eenc_ref, aadd_ref,
                    wd_ref, va_ref,
                    wx0e_ref, wx0c_ref, wxr_ref, wh_ref, bl_ref,
                    ow_ref, ob_ref, h0_ref, c0_ref,
                    out_ref, h_scr, c_scr, *val_scr,
                    L, H, Vp, mode, bos, Bblk):
    t = pl.program_id(1)
    feed_scr = val_scr[0] if mode == "validation" else None

    @pl.when(t == 0)
    def _init():
        h_scr[...] = h0_ref[...]
        c_scr[...] = c0_ref[...]
        out_ref[...] = jnp.zeros_like(out_ref)
        if mode == "validation":
            feed_scr[...] = jnp.full((Bblk, 1), bos, jnp.int32)

    # --- decoder input embedding ---
    if mode == "train":
        embed = emb_src_ref[0]                                    # (B,Ep) bf16, hoisted outside
    else:
        # greedy feedback: per-row dynamic slice of the (f32) embedding table
        rows = [emb_src_ref[pl.ds(feed_scr[b, 0], 1), :] for b in range(Bblk)]
        embed = jnp.concatenate(rows, axis=0).astype(jnp.bfloat16)

    # --- additive attention; softmax over the lane-dense padded S axis ---
    h_top = h_scr[L - 1].astype(jnp.bfloat16)
    e_dec = jnp.dot(h_top, wd_ref[...], preferred_element_type=jnp.float32)   # (B,Ap)
    feat = jnp.tanh(eenc_ref[...].astype(jnp.float32) + e_dec[:, None, :])    # (B,Sp,Ap)
    scores = jnp.sum(feat * va_ref[...], axis=-1) + aadd_ref[...]             # (B,Sp)
    m = jnp.max(scores, axis=-1, keepdims=True)
    p = jnp.exp(scores - m)
    alpha = p * pl.reciprocal(jnp.sum(p, axis=-1, keepdims=True), approx=True)
    ctx = jnp.einsum("bqs,bsh->bqh", alpha[:, None, :].astype(jnp.bfloat16),
                     enc_ref[...], preferred_element_type=jnp.float32)[:, 0, :]  # (B,Hp)

    # --- L-layer LSTM (gate-aligned 128-lane blocks, f32 state, bf16 matmuls) ---
    ctx_bf = ctx.astype(jnp.bfloat16)
    xin = None
    for l in range(L):
        h_bf = h_scr[l].astype(jnp.bfloat16)
        if l == 0:
            gates = (jnp.dot(embed, wx0e_ref[...], preferred_element_type=jnp.float32)
                     + jnp.dot(ctx_bf, wx0c_ref[...], preferred_element_type=jnp.float32)
                     + jnp.dot(h_bf, wh_ref[0], preferred_element_type=jnp.float32)
                     + bl_ref[0])
        else:
            gates = (jnp.dot(xin, wxr_ref[l - 1], preferred_element_type=jnp.float32)
                     + jnp.dot(h_bf, wh_ref[l], preferred_element_type=jnp.float32)
                     + bl_ref[l])
        i_g = jax.nn.sigmoid(gates[:, 0 * H:1 * H])
        f_g = jax.nn.sigmoid(gates[:, 1 * H:2 * H])
        g_g = jnp.tanh(gates[:, 2 * H:3 * H])
        o_g = jax.nn.sigmoid(gates[:, 3 * H:4 * H])
        c_new = f_g * c_scr[l] + i_g * g_g
        h_new = o_g * jnp.tanh(c_new)
        h_scr[l] = h_new
        c_scr[l] = c_new
        xin = h_new.astype(jnp.bfloat16)

    # --- vocab projection (padded vocab columns carry a -1e9 bias) ---
    logits = jnp.dot(xin, ow_ref[...], preferred_element_type=jnp.float32) + ob_ref[...]
    msk = msk_ref[0]                                              # (B,1) f32
    tgt = tgt_ref[0]                                              # (B,1) int32

    if mode == "train":
        iota = jax.lax.broadcasted_iota(jnp.int32, logits.shape, 1)
        mx = jnp.max(logits, axis=-1, keepdims=True)
        lse = jnp.log(jnp.sum(jnp.exp(logits - mx), axis=-1, keepdims=True)) + mx
        tgt_logit = jnp.sum(jnp.where(iota == tgt, logits, 0.0), axis=-1, keepdims=True)
        out_ref[...] += jnp.sum(msk * (lse - tgt_logit), keepdims=True).reshape(1, 1, 1)
    else:
        iota_f = jax.lax.broadcasted_iota(jnp.float32, logits.shape, 1)
        mx = jnp.max(logits, axis=-1, keepdims=True)
        idx = jnp.min(jnp.where(logits >= mx, iota_f, jnp.float32(Vp)),
                      axis=-1, keepdims=True).astype(jnp.int32)   # first argmax (exact, Vp < 2^24)
        hit = (idx == tgt).astype(jnp.float32)
        out_ref[...] += jnp.sum(msk * hit, keepdims=True).reshape(1, 1, 1)
        feed_scr[...] = idx                                       # greedy int32 feedback


def pallas_decode(mode, tgt_ids, step_mask, emb_src, enc_bsh, e_enc, aadd,
                  wd, va, wx0e, wx0c, wxr, wh, bl, ow, ob, h0, c0, *, bos, NB):
    T, Bp, _ = tgt_ids.shape
    L, _, Hp = h0.shape
    Sp = enc_bsh.shape[1]
    Ap = e_enc.shape[2]
    Vp = ow.shape[1]
    Ep = wx0e.shape[0]
    Bblk = Bp // NB

    def const_spec(a):
        nd = a.ndim
        return pl.BlockSpec(a.shape, lambda nb, t, _nd=nd: (0,) * _nd)

    emb_spec = (pl.BlockSpec((1, Bblk, Ep), lambda nb, t: (t, nb, 0))
                if mode == "train" else const_spec(emb_src))

    in_specs = [
        pl.BlockSpec((1, Bblk, 1), lambda nb, t: (t, nb, 0)),       # target ids (int32)
        pl.BlockSpec((1, Bblk, 1), lambda nb, t: (t, nb, 0)),       # step mask
        emb_spec,                                                   # hoisted embeds / table
        pl.BlockSpec((Bblk, Sp, Hp), lambda nb, t: (nb, 0, 0)),     # encoder seq (bf16)
        pl.BlockSpec((Bblk, Sp, Ap), lambda nb, t: (nb, 0, 0)),     # hoisted attn keys (bf16)
        pl.BlockSpec((Bblk, Sp), lambda nb, t: (nb, 0)),            # additive S-pad mask
        const_spec(wd), const_spec(va),
        const_spec(wx0e), const_spec(wx0c), const_spec(wxr),
        const_spec(wh), const_spec(bl),
        const_spec(ow), const_spec(ob),
        pl.BlockSpec((L, Bblk, Hp), lambda nb, t: (0, nb, 0)),      # initial h
        pl.BlockSpec((L, Bblk, Hp), lambda nb, t: (0, nb, 0)),      # initial c
    ]

    scratch = [pltpu.VMEM((L, Bblk, Hp), jnp.float32),              # dec_h
               pltpu.VMEM((L, Bblk, Hp), jnp.float32)]              # dec_c
    if mode == "validation":
        scratch.append(pltpu.VMEM((Bblk, 1), jnp.int32))            # greedy feedback indices

    # VMEM budget: resident (double-buffered) weights + streamed per-step blocks + scratch.
    resident = [enc_bsh, e_enc, aadd, wd, va, wx0e, wx0c, wxr, wh, bl, ow, ob, h0, c0]
    res_bytes = sum(_nbytes(a) for a in resident)
    stream_bytes = 2 * (Bblk * 4 + Bblk * 4)
    if mode == "train":
        stream_bytes += 2 * Bblk * Ep * 2
    else:
        res_bytes += _nbytes(emb_src)
    scratch_bytes = 8 * L * Bblk * Hp + 4 * Bblk
    vmem_limit = int(min(64 << 20,
                         max(16 << 20,
                             2 * res_bytes + 2 * stream_bytes + scratch_bytes + (4 << 20))))

    flops = 2 * NB * T * Bblk * (Hp * Ap + Sp * Hp + (Ep + 2 * Hp) * 4 * Hp
                                 + (L - 1) * 2 * Hp * 4 * Hp + Hp * Vp)
    transcend = NB * T * Bblk * (Sp * Ap + Sp + 8 * L * Hp + Vp)
    bytes_acc = (_nbytes(tgt_ids) + _nbytes(step_mask) + res_bytes
                 + (_nbytes(emb_src) if mode == "train" else 0) + 4 * NB)

    grid_spec = pltpu.PrefetchScalarGridSpec(
        num_scalar_prefetch=0,
        grid=(NB, T),
        in_specs=in_specs,
        out_specs=pl.BlockSpec((1, 1, 1), lambda nb, t: (nb, 0, 0)),
        scratch_shapes=scratch,
    )

    return pl.pallas_call(
        functools.partial(_decoder_kernel, L=L, H=Hp, Vp=Vp, mode=mode,
                          bos=bos, Bblk=Bblk),
        grid_spec=grid_spec,
        out_shape=jax.ShapeDtypeStruct((NB, 1, 1), jnp.float32),
        compiler_params=pltpu.CompilerParams(
            dimension_semantics=("parallel", "arbitrary"),
            vmem_limit_bytes=vmem_limit),
        cost_estimate=pl.CostEstimate(flops=flops, transcendentals=transcend,
                                      bytes_accessed=bytes_acc),
    )(tgt_ids, step_mask, emb_src, enc_bsh, e_enc, aadd,
      wd, va, wx0e, wx0c, wxr, wh, bl, ow, ob, h0, c0)


# ----------------------------------------------------------------------------
# Parameter construction (deterministic, synthetic) + 128-lane padding
# ----------------------------------------------------------------------------
def init_params(key, cfg):
    ks = iter(jax.random.split(key, 64))

    def nrm(shape):
        return 0.1 * jax.random.normal(next(ks), shape, dtype=jnp.float32)

    Cin, Cf, He, Hd, A, E, L, V = (cfg["Cin"], cfg["Cf"], cfg["He"], cfg["Hd"],
                                   cfg["A"], cfg["E"], cfg["L"], cfg["V"])
    return {
        # TODO(synk): stand-in for the undefined resnet50 backbone (1x1 conv + avg-pool).
        "backbone_w": nrm((Cin, Cf)), "backbone_b": nrm((Cf,)),
        "enc_w": nrm((Cf, He)), "enc_b": nrm((He,)),
        "enc_state_w": [nrm((He, He)) for _ in range(L)],
        "enc_state_b": [nrm((He,)) for _ in range(L)],
        "enc_cell_w": [nrm((He, He)) for _ in range(L)],
        "enc_cell_b": [nrm((He,)) for _ in range(L)],
        "embedding": nrm((V, E)),
        "attn_we": nrm((He, A)), "attn_wd": nrm((Hd, A)),
        "attn_ba": nrm((A,)), "attn_va": nrm((A,)),
        "lstm_wx": [nrm((E + He if l == 0 else Hd, 4 * Hd)) for l in range(L)],
        "lstm_wh": [nrm((Hd, 4 * Hd)) for l in range(L)],
        "lstm_b": [nrm((4 * Hd,)) for l in range(L)],
        "out_w": nrm((Hd, V)), "out_b": nrm((V,)),
    }


def pad_params(p, cfg):
    """Zero-pad lane dims to 128, gate-align LSTM weights, cast residents to bf16."""
    Cf, He, Hd, A, E, L, V = (cfg["Cf"], cfg["He"], cfg["Hd"], cfg["A"],
                              cfg["E"], cfg["L"], cfg["V"])
    assert He == Hd, "encoder->decoder state hand-off requires He == Hd"
    Cfp, Hp, Ap, Ep, Vp = (_round_up(Cf, LANE), _round_up(He, LANE),
                           _round_up(A, LANE), _round_up(E, LANE),
                           _round_up(V, LANE))
    bf16 = jnp.bfloat16

    def pad_gate_cols(w):
        # (rows, 4*Hd) -> (rows, 4*Hp) with each gate in its own 128-lane block
        return jnp.concatenate(
            [_pad_to(w[:, g * Hd:(g + 1) * Hd], (w.shape[0], Hp)) for g in range(4)],
            axis=1)

    out = {
        "backbone_w": _pad_to(p["backbone_w"], (p["backbone_w"].shape[0], Cfp)),
        "backbone_b": _pad_to(p["backbone_b"], (Cfp,)),
        "enc_w": _pad_to(p["enc_w"], (Cfp, Hp)),
        "enc_b": _pad_to(p["enc_b"], (Hp,)),
        # fused state/cell heads: columns = [state_0..state_{L-1}, cell_0..cell_{L-1}]
        "enc_sc_w": jnp.concatenate(
            [_pad_to(w, (Hp, Hp)) for w in p["enc_state_w"]]
            + [_pad_to(w, (Hp, Hp)) for w in p["enc_cell_w"]], axis=1),
        "enc_sc_b": jnp.concatenate(
            [_pad_to(b, (Hp,)) for b in p["enc_state_b"]]
            + [_pad_to(b, (Hp,)) for b in p["enc_cell_b"]], axis=0),
        "embedding": _pad_to(p["embedding"], (Vp, Ep)),              # f32 (see TODO above)
        "attn_we": _pad_to(p["attn_we"], (Hp, Ap)),
        "attn_ba": _pad_to(p["attn_ba"], (Ap,)),
        "attn_wd": _pad_to(p["attn_wd"], (Hp, Ap)).astype(bf16),
        "attn_va": _pad_to(p["attn_va"], (Ap,)).reshape(1, 1, Ap),
        "out_w": _pad_to(p["out_w"], (Hp, Vp)).astype(bf16),
        # padded vocab columns get a -1e9 bias -> never selected, exp underflows to 0
        "out_b": jnp.concatenate(
            [p["out_b"], jnp.full((Vp - V,), NEG_INF, jnp.float32)]),
        "dims": dict(Cfp=Cfp, Hp=Hp, Ap=Ap, Ep=Ep, Vp=Vp),
    }

    # layer-0 LSTM input is [embed(0:E) | ctx(0:He)] -> split into two row-block weights
    wx0 = p["lstm_wx"][0]
    out["lstm_wx0e"] = pad_gate_cols(_pad_to(wx0[:E], (Ep, 4 * Hd))).astype(bf16)
    out["lstm_wx0c"] = pad_gate_cols(_pad_to(wx0[E:], (Hp, 4 * Hd))).astype(bf16)
    if L > 1:
        out["lstm_wxr"] = jnp.stack(
            [pad_gate_cols(_pad_to(p["lstm_wx"][l], (Hp, 4 * Hd))) for l in range(1, L)]
        ).astype(bf16)
    else:
        out["lstm_wxr"] = jnp.zeros((1, Hp, 4 * Hp), bf16)
    out["lstm_wh"] = jnp.stack(
        [pad_gate_cols(_pad_to(p["lstm_wh"][l], (Hp, 4 * Hd))) for l in range(L)]).astype(bf16)
    out["lstm_b"] = jnp.stack(
        [pad_gate_cols(p["lstm_b"][l].reshape(1, 4 * Hd)) for l in range(L)])
    return out


# ----------------------------------------------------------------------------
# Forward pass
# ----------------------------------------------------------------------------
def anmt_forward(pp, cfg, x, Y, vocab, mode="train"):
    if mode not in ("train", "validation"):
        # TODO(synk): greedy inference early-exits on EOS via tensor.item(); not a static kernel loop.
        raise NotImplementedError("inference mode not implemented")

    B, Cin, Himg, Wimg = x.shape
    Hf, Wf, L = cfg["H"], cfg["W"], cfg["L"]
    S = Hf * Wf
    d = pp["dims"]
    Cfp, Hp, Ap, Ep, Vp = d["Cfp"], d["Hp"], d["Ap"], d["Ep"], d["Vp"]
    Sp = _round_up(S, LANE)

    # sublane-full batch for the decode kernel; padded rows are masked out of the loss
    Bp = _round_up(max(B, 8), 8)
    NB = 2 if Bp % 32 == 0 else 1          # batch-parallel grid axis (v7x two TensorCores)

    # ---- backbone: 1x1 conv (row-tiled Pallas matmul) + average pool ----
    x_rows = jnp.transpose(x, (0, 2, 3, 1)).reshape(B * Himg * Wimg, Cin)
    feat = pallas_linear(x_rows, pp["backbone_w"], pp["backbone_b"], "relu")
    feat = feat.reshape(B, Himg, Wimg, Cfp)
    ph, pw = Himg // Hf, Wimg // Wf
    feat = feat.reshape(B, Hf, ph, Wf, pw, Cfp).mean(axis=(2, 4))        # (B,Hf,Wf,Cfp)

    # ---- encoder ----
    enc_feat = pallas_linear(feat.reshape(B * Hf * Wf, Cfp),
                             pp["enc_w"], pp["enc_b"], "tanh").reshape(B, Hf, Wf, Hp)
    enc_seq = jnp.transpose(enc_feat, (1, 2, 0, 3)).reshape(S, B, Hp)    # (S,B,Hp)

    col_rows = enc_feat.mean(axis=1).reshape(B * Wf, Hp)                 # (B*Wf,Hp)
    sc = pallas_linear(col_rows, pp["enc_sc_w"], pp["enc_sc_b"], "tanh") # (B*Wf,2L*Hp)
    sc_last = sc.reshape(B, Wf, 2 * L, Hp)[:, -1]                        # last column
    enc_state = jnp.transpose(sc_last[:, :L], (1, 0, 2))                 # (L,B,Hp)
    enc_cell = jnp.transpose(sc_last[:, L:], (1, 0, 2))
    h0 = _pad_to(enc_state, (L, Bp, Hp))
    c0 = _pad_to(enc_cell, (L, Bp, Hp))

    # ---- step-invariant attention pre-compute (hoisted) -> padded, bf16 residents ----
    e_enc = pallas_linear(enc_seq.reshape(S * B, Hp), pp["attn_we"], pp["attn_ba"])
    e_enc = jnp.transpose(e_enc.reshape(S, B, Ap), (1, 0, 2))            # (B,S,Ap)
    e_enc = _pad_to(e_enc, (Bp, Sp, Ap)).astype(jnp.bfloat16)
    enc_bsh = _pad_to(jnp.transpose(enc_seq, (1, 0, 2)), (Bp, Sp, Hp)).astype(jnp.bfloat16)
    # purely additive mask: 0 on real S positions, -1e9 on padded ones
    aadd = jnp.concatenate([jnp.zeros((Bp, S), jnp.float32),
                            jnp.full((Bp, Sp - S), NEG_INF, jnp.float32)], axis=1)

    # ---- token preprocessing: int32 targets, EOS step masks (no one-hot streaming) ----
    T = Y.shape[1]
    Yt = Y.T.astype(jnp.int32)                                           # (T,B)
    bos, eos = vocab["<bos>"], vocab["<eos>"]
    not_eos = (Yt != eos).astype(jnp.float32)
    step_mask = jnp.concatenate([jnp.ones((1, B), jnp.float32),
                                 jnp.cumprod(not_eos, axis=0)[:-1]], axis=0)
    num_not_pad = jnp.sum(step_mask)
    tgt_ids = _pad_to(Yt, (T, Bp)).reshape(T, Bp, 1)
    step_mask_p = _pad_to(step_mask, (T, Bp)).reshape(T, Bp, 1)

    if mode == "train":
        # hoisted teacher-forced embeddings: one gather for all T steps, streamed bf16
        in_tok = jnp.concatenate([jnp.full((1, B), bos, jnp.int32), Yt[:-1]], axis=0)
        emb_seq = jnp.take(pp["embedding"], in_tok, axis=0)              # (T,B,Ep)
        emb_src = _pad_to(emb_seq, (T, Bp, Ep)).astype(jnp.bfloat16)
    else:
        emb_src = pp["embedding"]                                        # resident table (greedy feedback)

    # ---- fused weight-resident decode loop (one pallas_call for all T steps) ----
    total = pallas_decode(mode, tgt_ids, step_mask_p, emb_src, enc_bsh, e_enc, aadd,
                          pp["attn_wd"], pp["attn_va"],
                          pp["lstm_wx0e"], pp["lstm_wx0c"], pp["lstm_wxr"],
                          pp["lstm_wh"], pp["lstm_b"],
                          pp["out_w"], pp["out_b"].reshape(1, Vp),
                          h0, c0, bos=bos, NB=NB)
    return jnp.sum(total).reshape(1) / num_not_pad


# ----------------------------------------------------------------------------
# Pure-JAX (unpadded, highest-precision) reference of the same forward
# ----------------------------------------------------------------------------
def anmt_forward_ref(p, cfg, x, Y, vocab, mode="train"):
    dot = functools.partial(jnp.dot, precision=jax.lax.Precision.HIGHEST)
    B, Cin, Himg, Wimg = x.shape
    Hf, Wf, He, Hd, L = cfg["H"], cfg["W"], cfg["He"], cfg["Hd"], cfg["L"]
    S = Hf * Wf
    x_rows = jnp.transpose(x, (0, 2, 3, 1)).reshape(-1, Cin)
    feat = jnp.maximum(dot(x_rows, p["backbone_w"]) + p["backbone_b"], 0.0)
    feat = feat.reshape(B, Himg, Wimg, -1)
    ph, pw = Himg // Hf, Wimg // Wf
    feat = feat.reshape(B, Hf, ph, Wf, pw, -1).mean(axis=(2, 4))
    enc = jnp.tanh(dot(feat.reshape(B * Hf * Wf, -1), p["enc_w"]) + p["enc_b"])
    enc = enc.reshape(B, Hf, Wf, He)
    enc_seq = jnp.transpose(enc, (1, 2, 0, 3)).reshape(S, B, He)
    col = enc.mean(axis=1).reshape(B * Wf, He)
    dec_h, dec_c = [], []
    for l in range(L):
        s = jnp.tanh(dot(col, p["enc_state_w"][l]) + p["enc_state_b"][l]).reshape(B, Wf, He)
        c = jnp.tanh(dot(col, p["enc_cell_w"][l]) + p["enc_cell_b"][l]).reshape(B, Wf, He)
        dec_h.append(s[:, -1])
        dec_c.append(c[:, -1])
    e_enc = dot(enc_seq.reshape(S * B, He), p["attn_we"]).reshape(S, B, -1) + p["attn_ba"]
    bos, eos = vocab["<bos>"], vocab["<eos>"]
    dec_input = jnp.full((B,), bos, jnp.int32)
    mask = jnp.ones((B,), jnp.float32)
    num_not_pad = jnp.zeros((), jnp.float32)
    total = jnp.zeros((), jnp.float32)
    for t in range(Y.shape[1]):
        y = Y[:, t]
        embed = p["embedding"][dec_input]
        e_dec = dot(dec_h[-1], p["attn_wd"])
        feat_a = jnp.tanh(e_enc + e_dec[None, :, :])
        scores = jnp.sum(feat_a * p["attn_va"], axis=-1)          # (S,B); mask == ones
        alpha = jax.nn.softmax(scores, axis=0)
        ctx = jnp.sum(alpha[:, :, None] * enc_seq, axis=0)
        xin = jnp.concatenate([embed, ctx], axis=1)
        for l in range(L):
            gates = dot(xin, p["lstm_wx"][l]) + dot(dec_h[l], p["lstm_wh"][l]) + p["lstm_b"][l]
            i_g = jax.nn.sigmoid(gates[:, :Hd])
            f_g = jax.nn.sigmoid(gates[:, Hd:2 * Hd])
            g_g = jnp.tanh(gates[:, 2 * Hd:3 * Hd])
            o_g = jax.nn.sigmoid(gates[:, 3 * Hd:])
            c_new = f_g * dec_c[l] + i_g * g_g
            h_new = o_g * jnp.tanh(c_new)
            dec_h[l], dec_c[l] = h_new, c_new
            xin = h_new
        logits = dot(xin, p["out_w"]) + p["out_b"]
        if mode == "train":
            lse = jax.scipy.special.logsumexp(logits, axis=1)
            ce = lse - jnp.take_along_axis(logits, y[:, None], axis=1)[:, 0]
            total = total + jnp.sum(mask * ce)
            dec_input = y
        else:
            idx = jnp.argmax(logits, axis=1).astype(jnp.int32)
            total = total + jnp.sum(mask * (idx == y).astype(jnp.float32))
            dec_input = idx
        num_not_pad = num_not_pad + jnp.sum(mask)
        mask = mask * (y != eos).astype(jnp.float32)
    return (total / num_not_pad).reshape(1)


# ----------------------------------------------------------------------------
# Demo
# ----------------------------------------------------------------------------
if __name__ == "__main__":
    vocab_tokens = ["<pad>", "<bos>", "<eos>", "a", "b", "c", "d", "e", "f",
                    "g", "h", "i"]
    vocab = {tok: i for i, tok in enumerate(vocab_tokens)}

    cfg = dict(
        Cin=4,          # input image channels
        Cf=8,           # backbone feature channels
        H=4, W=4,       # encoder feature-map spatial dims (en_seq_len = 16)
        He=32,          # en_hidden_size
        Hd=32,          # de_hidden_size (== en_hidden_size for state hand-off)
        A=16,           # attention_size
        E=8,            # embed_size
        L=2,            # num_layers
        V=len(vocab),   # vocab size
    )

    key = jax.random.PRNGKey(0)
    k_param, k_x, k_y = jax.random.split(key, 3)

    params = init_params(k_param, cfg)
    padded = pad_params(params, cfg)

    B, T = 2, 5
    x = jax.random.normal(k_x, (B, cfg["Cin"], 16, 16), dtype=jnp.float32)
    Y = jax.random.randint(k_y, (B, T), 3, cfg["V"], dtype=jnp.int32)

    loss = anmt_forward(padded, cfg, x, Y, vocab, mode="train")
    acc = anmt_forward(padded, cfg, x, Y, vocab, mode="validation")
    jax.block_until_ready((loss, acc))

    loss_ref = anmt_forward_ref(params, cfg, x, Y, vocab, mode="train")

    assert loss.shape == (1,) and bool(jnp.isfinite(loss).all())
    assert acc.shape == (1,) and bool(jnp.isfinite(acc).all())
    # bf16 resident weights + approx reciprocal vs HIGHEST-precision f32 reference
    assert bool(jnp.allclose(loss, loss_ref, rtol=5e-2, atol=5e-2)), (loss, loss_ref)
    assert 0.0 <= float(acc[0]) <= 1.0 + 1e-6
    print("KERNEL_OK")
</pallas_src>

<mosaic_0001>
module attributes {stable_mosaic.version = 11 : i64} {
  func.func @_linear_kernel(%arg0: i32, %arg1: memref<512x4xf32, #tpu.memory_space<vmem>>, %arg2: memref<4x128xf32, #tpu.memory_space<vmem>>, %arg3: memref<1x128xf32, #tpu.memory_space<vmem>>, %arg4: memref<512x128xf32, #tpu.memory_space<vmem>>) attributes {dimension_semantics = [#tpu.dimension_semantics<parallel>], iteration_bounds = array<i64: 1>, scalar_prefetch = 0 : i64, scratch_operands = 0 : i64, tpu.core_type = #tpu.core_type<tc>, window_params = [{transform_indices = @transform_0, window_bounds = array<i64: 512, 4>}, {pipeline_mode = #tpu.pipeline_mode<synchronous>, transform_indices = @transform_1, window_bounds = array<i64: 4, 128>}, {pipeline_mode = #tpu.pipeline_mode<synchronous>, transform_indices = @transform_2, window_bounds = array<i64: 1, 128>}, {transform_indices = @transform_3, window_bounds = array<i64: 512, 128>}]} {
    %c0 = arith.constant 0 : index
    %c0_0 = arith.constant 0 : index
    %0 = vector.load %arg1[%c0, %c0_0] : memref<512x4xf32, #tpu.memory_space<vmem>>, vector<512x4xf32>
    %c0_1 = arith.constant 0 : index
    %c0_2 = arith.constant 0 : index
    %1 = vector.load %arg2[%c0_1, %c0_2] : memref<4x128xf32, #tpu.memory_space<vmem>>, vector<4x128xf32>
    %cst = arith.constant dense<0.000000e+00> : vector<512x128xf32>
    %2 = tpu.matmul %0, %1, %cst {dimension_numbers = #tpu.dot_dimension_numbers<[1], [0], [0], [1], [0, 0, 1, 1], [], []>} : vector<512x4xf32>, vector<4x128xf32>, vector<512x128xf32> -> vector<512x128xf32>
    %c0_3 = arith.constant 0 : index
    %c0_4 = arith.constant 0 : index
    %3 = vector.load %arg3[%c0_3, %c0_4] : memref<1x128xf32, #tpu.memory_space<vmem>>, vector<1x128xf32>
    %4 = vector.broadcast %3 : vector<1x128xf32> to vector<512x128xf32>
    %5 = arith.addf %2, %4 : vector<512x128xf32>
    %cst_5 = arith.constant 0.000000e+00 : f32
    %6 = vector.broadcast %cst_5 : f32 to vector<512x128xf32>
    %7 = arith.maximumf %5, %6 : vector<512x128xf32>
    %c0_6 = arith.constant 0 : index
    %c0_7 = arith.constant 0 : index
    %8 = vector.load %arg4[%c0_6, %c0_7] : memref<512x128xf32, #tpu.memory_space<vmem>>, vector<512x128xf32>
    tpu.vector_store %arg4[%c0_6, %c0_7], %7 {strides = array<i32>} : memref<512x128xf32, #tpu.memory_space<vmem>>, vector<512x128xf32>,
    return
  }
  func.func @transform_0(%arg0: i32) -> (i32, i32) {
    %c0_i32 = arith.constant 0 : i32
    %c0_i32_0 = arith.constant 0 : i32
    return %arg0, %c0_i32 : i32, i32
  }
  func.func @transform_1(%arg0: i32) -> (i32, i32) {
    %c0_i32 = arith.constant 0 : i32
    %c0_i32_0 = arith.constant 0 : i32
    %c0_i32_1 = arith.constant 0 : i32
    return %c0_i32, %c0_i32_0 : i32, i32
  }
  func.func @transform_2(%arg0: i32) -> (i32, i32) {
    %c0_i32 = arith.constant 0 : i32
    %c0_i32_0 = arith.constant 0 : i32
    %c0_i32_1 = arith.constant 0 : i32
    return %c0_i32, %c0_i32_0 : i32, i32
  }
  func.func @transform_3(%arg0: i32) -> (i32, i32) {
    %c0_i32 = arith.constant 0 : i32
    %c0_i32_0 = arith.constant 0 : i32
    return %arg0, %c0_i32 : i32, i32
  }
}

</mosaic_0001>

<llo_original>
// kernel: tpu_custom_call.1
$region0: #{tpu_custom_call.1}
  #allocation0 [shape = 'u32[]', space=smem, size = 0x4, offset = 0x4, fixed_abs, tag = 'smem constant byte address 0x4 - core index']
  #allocation1 [shape = 'u32[144,128]{1,0:T(1,128)}', space=vmem, size = 0x12000, scoped, tag = 'internal scratch']
  %s0 = inlined_call_operand.vmem [shape: f32[512,4], index: 0, kind: input, shape index: {}]
  %s1 = inlined_call_operand.vmem [shape: f32[4,128], index: 1, kind: input, shape index: {}]
  %s2 = inlined_call_operand.vmem [shape: f32[1,128], index: 2, kind: input, shape index: {}]
  %s3 = inlined_call_operand.hbm [shape: f32[512,128], index: 3, kind: output, shape index: {}]
  %s4 = sld [smem:[#allocation0]]
  $region22: #{tpu_custom_call.1} parent=0
    _
  %s6 = ssub.s32 1, %s4
  %s7 = scalar_select 0, %s6, %s4
  $region1: #{tpu_custom_call.1} parent=0
    #allocation2 [shape = 'u8[262144]{0}', space=vmem, size = 0x40000, scoped, tag = 'output window, operand 0, single buffered']
    #allocation3 [shape = 's32[1]{0}', space=sflag, size = 0x4, scoped, tag = 'scoped memory for tpu_custom_call.1']
    %8 = vsyncpa [#allocation3], 0
    // Predicated region
    $region2: #{tpu_custom_call.1} parent=1 // pred_check
      _
    $region3: #{tpu_custom_call.1} parent=1 // pred_check_branch
      %10 = sbr.rel (0) target = $region5
    $region4: #{tpu_custom_call.1} parent=1 // pred_region
      _
    $region5: #{tpu_custom_call.1} parent=1 // pred_fallthru
      _
    // Predicated region
    $region6: #{tpu_custom_call.1} parent=1 // pred_check
      _
    $region7: #{tpu_custom_call.1} parent=1 // pred_check_branch
      %12 = sbr.rel (0) target = $region9
    $region8: #{tpu_custom_call.1} parent=1 // pred_region
      _
    $region9: #{tpu_custom_call.1} parent=1 // pred_fallthru
      _
    // Predicated region
    $region10: #{tpu_custom_call.1} parent=1 // pred_check
      _
    $region11: #{tpu_custom_call.1} parent=1 // pred_check_branch
      %14 = sbr.rel (0) target = $region13
    $region12: #{tpu_custom_call.1} parent=1 // pred_region
      _
    $region13: #{tpu_custom_call.1} parent=1 // pred_fallthru
      _
    %v15 = vld [vmem:[%s0] sm:$0xff]
    %v16 = vld [vmem:[%s0 + $0x8] sm:$0xff]
    %v17 = vld [vmem:[%s0 + $0x10] sm:$0xff]
    %v18 = vld [vmem:[%s0 + $0x18] sm:$0xff]
    %v19 = vld [vmem:[%s0 + $0x20] sm:$0xff]
    %v20 = vld [vmem:[%s0 + $0x28] sm:$0xff]
    %v21 = vld [vmem:[%s0 + $0x30] sm:$0xff]
    %v22 = vld [vmem:[%s0 + $0x38] sm:$0xff]
    %v23 = vld [vmem:[%s0 + $0x40] sm:$0xff]
    %v24 = vld [vmem:[%s0 + $0x48] sm:$0xff]
    %v25 = vld [vmem:[%s0 + $0x50] sm:$0xff]
    %v26 = vld [vmem:[%s0 + $0x58] sm:$0xff]
    %v27 = vld [vmem:[%s0 + $0x60] sm:$0xff]
    %v28 = vld [vmem:[%s0 + $0x68] sm:$0xff]
    %v29 = vld [vmem:[%s0 + $0x70] sm:$0xff]
    %v30 = vld [vmem:[%s0 + $0x78] sm:$0xff]
    %v31 = vld [vmem:[%s0 + $0x80] sm:$0xff]
    %v32 = vld [vmem:[%s0 + $0x88] sm:$0xff]
    %v33 = vld [vmem:[%s0 + $0x90] sm:$0xff]
    %v34 = vld [vmem:[%s0 + $0x98] sm:$0xff]
    %v35 = vld [vmem:[%s0 + $0xa0] sm:$0xff]
    %v36 = vld [vmem:[%s0 + $0xa8] sm:$0xff]
    %v37 = vld [vmem:[%s0 + $0xb0] sm:$0xff]
    %v38 = vld [vmem:[%s0 + $0xb8] sm:$0xff]
    %v39 = vld [vmem:[%s0 + $0xc0] sm:$0xff]
    %v40 = vld [vmem:[%s0 + $0xc8] sm:$0xff]
    %v41 = vld [vmem:[%s0 + $0xd0] sm:$0xff]
    %v42 = vld [vmem:[%s0 + $0xd8] sm:$0xff]
    %v43 = vld [vmem:[%s0 + $0xe0] sm:$0xff]
    %v44 = vld [vmem:[%s0 + $0xe8] sm:$0xff]
    %v45 = vld [vmem:[%s0 + $0xf0] sm:$0xff]
    %v46 = vld [vmem:[%s0 + $0xf8] sm:$0xff]
    %v47 = vld [vmem:[%s0 + $0x100] sm:$0xff]
    %v48 = vld [vmem:[%s0 + $0x108] sm:$0xff]
    %v49 = vld [vmem:[%s0 + $0x110] sm:$0xff]
    %v50 = vld [vmem:[%s0 + $0x118] sm:$0xff]
    %v51 = vld [vmem:[%s0 + $0x120] sm:$0xff]
    %v52 = vld [vmem:[%s0 + $0x128] sm:$0xff]
    %v53 = vld [vmem:[%s0 + $0x130] sm:$0xff]
    %v54 = vld [vmem:[%s0 + $0x138] sm:$0xff]
    %v55 = vld [vmem:[%s0 + $0x140] sm:$0xff]
    %v56 = vld [vmem:[%s0 + $0x148] sm:$0xff]
    %v57 = vld [vmem:[%s0 + $0x150] sm:$0xff]
    %v58 = vld [vmem:[%s0 + $0x158] sm:$0xff]
    %v59 = vld [vmem:[%s0 + $0x160] sm:$0xff]
    %v60 = vld [vmem:[%s0 + $0x168] sm:$0xff]
    %v61 = vld [vmem:[%s0 + $0x170] sm:$0xff]
    %v62 = vld [vmem:[%s0 + $0x178] sm:$0xff]
    %v63 = vld [vmem:[%s0 + $0x180] sm:$0xff]
    %v64 = vld [vmem:[%s0 + $0x188] sm:$0xff]
    %v65 = vld [vmem:[%s0 + $0x190] sm:$0xff]
    %v66 = vld [vmem:[%s0 + $0x198] sm:$0xff]
    %v67 = vld [vmem:[%s0 + $0x1a0] sm:$0xff]
    %v68 = vld [vmem:[%s0 + $0x1a8] sm:$0xff]
    %v69 = vld [vmem:[%s0 + $0x1b0] sm:$0xff]
    %v70 = vld [vmem:[%s0 + $0x1b8] sm:$0xff]
    %v71 = vld [vmem:[%s0 + $0x1c0] sm:$0xff]
    %v72 = vld [vmem:[%s0 + $0x1c8] sm:$0xff]
    %v73 = vld [vmem:[%s0 + $0x1d0] sm:$0xff]
    %v74 = vld [vmem:[%s0 + $0x1d8] sm:$0xff]
    %v75 = vld [vmem:[%s0 + $0x1e0] sm:$0xff]
    %v76 = vld [vmem:[%s0 + $0x1e8] sm:$0xff]
    %v77 = vld [vmem:[%s0 + $0x1f0] sm:$0xff]
    %v78 = vld [vmem:[%s0 + $0x1f8] sm:$0xff]
    %v79 = vld [vmem:[%s1] sm:$0xf]
    %v80 = vld [vmem:[%s2] sm:$0x1]
    %v82 = vlaneseq
    %v83 = vshrl.u32 %v82, 7
    %v84 = vsub.s32 0, %v83
    %v85 = vrot.slane %v80, %v84
    %vm87 = vcmask 31744
    %v89 = vsel %vm87, %v15, 0
    %v92 = vsel %vm87, %v16, 0
    %v95 = vsel %vm87, %v17, 0
    %v98 = vsel %vm87, %v18, 0
    %v101 = vsel %vm87, %v19, 0
    %v104 = vsel %vm87, %v20, 0
    %v107 = vsel %vm87, %v21, 0
    %v110 = vsel %vm87, %v22, 0
    %v113 = vsel %vm87, %v23, 0
    %v116 = vsel %vm87, %v24, 0
    %v119 = vsel %vm87, %v25, 0
    %v122 = vsel %vm87, %v26, 0
    %v125 = vsel %vm87, %v27, 0
    %v128 = vsel %vm87, %v28, 0
    %v131 = vsel %vm87, %v29, 0
    %v134 = vsel %vm87, %v30, 0
    %v137 = vsel %vm87, %v31, 0
    %v140 = vsel %vm87, %v32, 0
    %v143 = vsel %vm87, %v33, 0
    %v146 = vsel %vm87, %v34, 0
    %v149 = vsel %vm87, %v35, 0
    %v152 = vsel %vm87, %v36, 0
    %v155 = vsel %vm87, %v37, 0
    %v158 = vsel %vm87, %v38, 0
    %v161 = vsel %vm87, %v39, 0
    %v164 = vsel %vm87, %v40, 0
    %v167 = vsel %vm87, %v41, 0
    %v170 = vsel %vm87, %v42, 0
    %v173 = vsel %vm87, %v43, 0
    %v176 = vsel %vm87, %v44, 0
    %v179 = vsel %vm87, %v45, 0
    %v182 = vsel %vm87, %v46, 0
    %v185 = vsel %vm87, %v47, 0
    %v188 = vsel %vm87, %v48, 0
    %v191 = vsel %vm87, %v49, 0
    %v194 = vsel %vm87, %v50, 0
    %v197 = vsel %vm87, %v51, 0
    %v200 = vsel %vm87, %v52, 0
    %v203 = vsel %vm87, %v53, 0
    %v206 = vsel %vm87, %v54, 0
    %v209 = vsel %vm87, %v55, 0
    %v212 = vsel %vm87, %v56, 0
    %v215 = vsel %vm87, %v57, 0
    %v218 = vsel %vm87, %v58, 0
    %v221 = vsel %vm87, %v59, 0
    %v224 = vsel %vm87, %v60, 0
    %v227 = vsel %vm87, %v61, 0
    %v230 = vsel %vm87, %v62, 0
    %v233 = vsel %vm87, %v63, 0
    %v236 = vsel %vm87, %v64, 0
    %v239 = vsel %vm87, %v65, 0
    %v242 = vsel %vm87, %v66, 0
    %v245 = vsel %vm87, %v67, 0
    %v248 = vsel %vm87, %v68, 0
    %v251 = vsel %vm87, %v69, 0
    %v254 = vsel %vm87, %v70, 0
    %v257 = vsel %vm87, %v71, 0
    %v260 = vsel %vm87, %v72, 0
    %v263 = vsel %vm87, %v73, 0
    %v266 = vsel %vm87, %v74, 0
    %v269 = vsel %vm87, %v75, 0
    %v272 = vsel %vm87, %v76, 0
    %v275 = vsel %vm87, %v77, 0
    %v278 = vsel %vm87, %v78, 0
    %vm280 = vcmask 1043456
    %v282 = vsel %vm280, %v79, 0
    %284 = vmatprep.subr.mxu0 0.0
    %285 = vmatpush1.msra.mxu0 %v282
    %286 = vmatprep.subr.mxu0 0.0
    %287 = vmatpush1.msra.mxu0 0.0
    %288 = vmatprep.subr.mxu0 0.0
    %289 = vmatpush1.msra.mxu0 0.0
    %290 = vmatprep.subr.mxu0 0.0
    %291 = vmatpush1.msra.mxu0 0.0
    %292 = vmatprep.subr.mxu0 0.0
    %293 = vmatpush1.msra.mxu0 0.0
    %294 = vmatprep.subr.mxu0 0.0
    %295 = vmatpush1.msra.mxu0 0.0
    %296 = vmatprep.subr.mxu0 0.0
    %297 = vmatpush1.msra.mxu0 0.0
    %298 = vmatprep.subr.mxu0 0.0
    %299 = vmatpush1.msra.mxu0 0.0
    %300 = vmatprep.subr.mxu0 0.0
    %301 = vmatpush1.msra.mxu0 0.0
    %302 = vmatprep.subr.mxu0 0.0
    %303 = vmatpush1.msra.mxu0 0.0
    %304 = vmatprep.subr.mxu0 0.0
    %305 = vmatpush1.msra.mxu0 0.0
    %306 = vmatprep.subr.mxu0 0.0
    %307 = vmatpush1.msra.mxu0 0.0
    %308 = vmatprep.subr.mxu0 0.0
    %309 = vmatpush1.msra.mxu0 0.0
    %310 = vmatprep.subr.mxu0 0.0
    %311 = vmatpush1.msra.mxu0 0.0
    %312 = vmatprep.subr.mxu0 0.0
    %313 = vmatpush1.msra.mxu0 0.0
    %314 = vmatprep.subr.mxu0 0.0
    %315 = vmatpush1.msra.mxu0 0.0
    %316 = vmatprep.subr.mxu0 0.0
    %317 = vmatpush1.msra.mxu0 0.0
    %318 = vmatprep.subr.mxu0 0.0
    %319 = vmatpush1.msra.mxu0 0.0
    %320 = vmatprep.subr.mxu0 0.0
    %321 = vmatpush1.msra.mxu0 0.0
    %322 = vmatprep.subr.mxu0 0.0
    %323 = vmatpush1.msra.mxu0 0.0
    %324 = vmatprep.subr.mxu0 0.0
    %325 = vmatpush1.msra.mxu0 0.0
    %326 = vmatprep.subr.mxu0 0.0
    %327 = vmatpush1.msra.mxu0 0.0
    %328 = vmatprep.subr.mxu0 0.0
    %329 = vmatpush1.msra.mxu0 0.0
    %330 = vmatprep.subr.mxu0 0.0
    %331 = vmatpush1.msra.mxu0 0.0
    %332 = vmatprep.subr.mxu0 0.0
    %333 = vmatpush1.msra.mxu0 0.0
    %334 = vmatprep.subr.mxu0 0.0
    %335 = vmatpush1.msra.mxu0 0.0
    %336 = vmatprep.subr.mxu0 0.0
    %337 = vmatpush1.msra.mxu0 0.0
    %338 = vmatprep.subr.mxu0 0.0
    %339 = vmatpush1.msra.mxu0 0.0
    %340 = vmatprep.subr.mxu0 0.0
    %341 = vmatpush1.msra.mxu0 0.0
    %342 = vmatprep.subr.mxu0 0.0
    %343 = vmatpush1.msra.mxu0 0.0
    %344 = vmatprep.subr.mxu0 0.0
    %345 = vmatpush1.msra.mxu0 0.0
    %346 = vmatprep.subr.mxu0 0.0
    %347 = vmatpush1.msra.mxu0 0.0
    %348 = vmatprep.mubr.f32.mxu0 0.0
    %349 = vmatmul.mubr.f32.gmra.mrb[0].mxu0 %v89
    %v350 = vpop.f32.mrb[0].mxu0
    %v351 = vadd.f32 %v85, %v350
    %v352 = vpop.f32.mrb[0].mxu0
    %353 = vmatprep.mubr.f32.mxu0 0.0
    %354 = vmatmul.mubr.f32.gmra.mrb[0].mxu0 %v92
    %v355 = vpop.f32.mrb[0].mxu0
    %v356 = vadd.f32 %v85, %v355
    %v357 = vpop.f32.mrb[0].mxu0
    %358 = vmatprep.mubr.f32.mxu0 0.0
    %359 = vmatmul.mubr.f32.gmra.mrb[0].mxu0 %v95
    %v360 = vpop.f32.mrb[0].mxu0
    %v361 = vadd.f32 %v85, %v360
    %v362 = vpop.f32.mrb[0].mxu0
    %363 = vmatprep.mubr.f32.mxu0 0.0
    %364 = vmatmul.mubr.f32.gmra.mrb[0].mxu0 %v98
    %v365 = vpop.f32.mrb[0].mxu0
    %v366 = vadd.f32 %v85, %v365
    %v367 = vpop.f32.mrb[0].mxu0
    %368 = vmatprep.mubr.f32.mxu0 0.0
    %369 = vmatmul.mubr.f32.gmra.mrb[0].mxu0 %v101
    %v370 = vpop.f32.mrb[0].mxu0
    %v371 = vadd.f32 %v85, %v370
    %v372 = vpop.f32.mrb[0].mxu0
    %373 = vmatprep.mubr.f32.mxu0 0.0
    %374 = vmatmul.mubr.f32.gmra.mrb[0].mxu0 %v104
    %v375 = vpop.f32.mrb[0].mxu0
    %v376 = vadd.f32 %v85, %v375
    %v377 = vpop.f32.mrb[0].mxu0
    %378 = vmatprep.mubr.f32.mxu0 0.0
    %379 = vmatmul.mubr.f32.gmra.mrb[0].mxu0 %v107
    %v380 = vpop.f32.mrb[0].mxu0
    %v381 = vadd.f32 %v85, %v380
    %v382 = vpop.f32.mrb[0].mxu0
    %383 = vmatprep.mubr.f32.mxu0 0.0
    %384 = vmatmul.mubr.f32.gmra.mrb[0].mxu0 %v110
    %v385 = vpop.f32.mrb[0].mxu0
    %v386 = vadd.f32 %v85, %v385
    %v387 = vpop.f32.mrb[0].mxu0
    %388 = vmatprep.mubr.f32.mxu0 0.0
    %389 = vmatmul.mubr.f32.gmra.mrb[0].mxu0 %v113
    %v390 = vpop.f32.mrb[0].mxu0
    %v391 = vadd.f32 %v85, %v390
    %v392 = vpop.f32.mrb[0].mxu0
    %393 = vmatprep.mubr.f32.mxu0 0.0
    %394 = vmatmul.mubr.f32.gmra.mrb[0].mxu0 %v116
    %v395 = vpop.f32.mrb[0].mxu0
    %v396 = vadd.f32 %v85, %v395
    %v397 = vpop.f32.mrb[0].mxu0
    %398 = vmatprep.mubr.f32.mxu0 0.0
    %399 = vmatmul.mubr.f32.gmra.mrb[0].mxu0 %v119
    %v400 = vpop.f32.mrb[0].mxu0
    %v401 = vadd.f32 %v85, %v400
    %v402 = vpop.f32.mrb[0].mxu0
    %403 = vmatprep.mubr.f32.mxu0 0.0
    %404 = vmatmul.mubr.f32.gmra.mrb[0].mxu0 %v122
    %v405 = vpop.f32.mrb[0].mxu0
    %v406 = vadd.f32 %v85, %v405
    %v407 = vpop.f32.mrb[0].mxu0
    %408 = vmatprep.mubr.f32.mxu0 0.0
    %409 = vmatmul.mubr.f32.gmra.mrb[0].mxu0 %v125
    %v410 = vpop.f32.mrb[0].mxu0
    %v411 = vadd.f32 %v85, %v410
    %v412 = vpop.f32.mrb[0].mxu0
    %413 = vmatprep.mubr.f32.mxu0 0.0
    %414 = vmatmul.mubr.f32.gmra.mrb[0].mxu0 %v128
    %v415 = vpop.f32.mrb[0].mxu0
    %v416 = vadd.f32 %v85, %v415
    %v417 = vpop.f32.mrb[0].mxu0
    %418 = vmatprep.mubr.f32.mxu0 0.0
    %419 = vmatmul.mubr.f32.gmra.mrb[0].mxu0 %v131
    %v420 = vpop.f32.mrb[0].mxu0
    %v421 = vadd.f32 %v85, %v420
    %v422 = vpop.f32.mrb[0].mxu0
    %423 = vmatprep.mubr.f32.mxu0 0.0
    %424 = vmatmul.mubr.f32.gmra.mrb[0].mxu0 %v134
    %v425 = vpop.f32.mrb[0].mxu0
    %v426 = vadd.f32 %v85, %v425
    %v427 = vpop.f32.mrb[0].mxu0
    %428 = vmatprep.mubr.f32.mxu0 0.0
    %429 = vmatmul.mubr.f32.gmra.mrb[0].mxu0 %v137
    %v430 = vpop.f32.mrb[0].mxu0
    %v431 = vadd.f32 %v85, %v430
    %v432 = vpop.f32.mrb[0].mxu0
    %433 = vmatprep.mubr.f32.mxu0 0.0
    %434 = vmatmul.mubr.f32.gmra.mrb[0].mxu0 %v140
    %v435 = vpop.f32.mrb[0].mxu0
    %v436 = vadd.f32 %v85, %v435
    %v437 = vpop.f32.mrb[0].mxu0
    %438 = vmatprep.mubr.f32.mxu0 0.0
    %439 = vmatmul.mubr.f32.gmra.mrb[0].mxu0 %v143
    %v440 = vpop.f32.mrb[0].mxu0
    %v441 = vadd.f32 %v85, %v440
    %v442 = vpop.f32.mrb[0].mxu0
    %443 = vmatprep.mubr.f32.mxu0 0.0
    %444 = vmatmul.mubr.f32.gmra.mrb[0].mxu0 %v146
    %v445 = vpop.f32.mrb[0].mxu0
    %v446 = vadd.f32 %v85, %v445
    %v447 = vpop.f32.mrb[0].mxu0
    %448 = vmatprep.mubr.f32.mxu0 0.0
    %449 = vmatmul.mubr.f32.gmra.mrb[0].mxu0 %v149
    %v450 = vpop.f32.mrb[0].mxu0
    %v451 = vadd.f32 %v85, %v450
    %v452 = vpop.f32.mrb[0].mxu0
    %453 = vmatprep.mubr.f32.mxu0 0.0
    %454 = vmatmul.mubr.f32.gmra.mrb[0].mxu0 %v152
    %v455 = vpop.f32.mrb[0].mxu0
    %v456 = vadd.f32 %v85, %v455
    %v457 = vpop.f32.mrb[0].mxu0
    %458 = vmatprep.mubr.f32.mxu0 0.0
    %459 = vmatmul.mubr.f32.gmra.mrb[0].mxu0 %v155
    %v460 = vpop.f32.mrb[0].mxu0
    %v461 = vadd.f32 %v85, %v460
    %v462 = vpop.f32.mrb[0].mxu0
    %463 = vmatprep.mubr.f32.mxu0 0.0
    %464 = vmatmul.mubr.f32.gmra.mrb[0].mxu0 %v158
    %v465 = vpop.f32.mrb[0].mxu0
    %v466 = vadd.f32 %v85, %v465
    %v467 = vpop.f32.mrb[0].mxu0
    %468 = vmatprep.mubr.f32.mxu0 0.0
    %469 = vmatmul.mubr.f32.gmra.mrb[0].mxu0 %v161
    %v470 = vpop.f32.mrb[0].mxu0
    %v471 = vadd.f32 %v85, %v470
    %v472 = vpop.f32.mrb[0].mxu0
    %473 = vmatprep.mubr.f32.mxu0 0.0
    %474 = vmatmul.mubr.f32.gmra.mrb[0].mxu0 %v164
    %v475 = vpop.f32.mrb[0].mxu0
    %v476 = vadd.f32 %v85, %v475
    %v477 = vpop.f32.mrb[0].mxu0
    %478 = vmatprep.mubr.f32.mxu0 0.0
    %479 = vmatmul.mubr.f32.gmra.mrb[0].mxu0 %v167
    %v480 = vpop.f32.mrb[0].mxu0
    %v481 = vadd.f32 %v85, %v480
    %v482 = vpop.f32.mrb[0].mxu0
    %483 = vmatprep.mubr.f32.mxu0 0.0
    %484 = vmatmul.mubr.f32.gmra.mrb[0].mxu0 %v170
    %v485 = vpop.f32.mrb[0].mxu0
    %v486 = vadd.f32 %v85, %v485
    %v487 = vpop.f32.mrb[0].mxu0
    %488 = vmatprep.mubr.f32.mxu0 0.0
    %489 = vmatmul.mubr.f32.gmra.mrb[0].mxu0 %v173
    %v490 = vpop.f32.mrb[0].mxu0
    %v491 = vadd.f32 %v85, %v490
    %v492 = vpop.f32.mrb[0].mxu0
    %493 = vmatprep.mubr.f32.mxu0 0.0
    %494 = vmatmul.mubr.f32.gmra.mrb[0].mxu0 %v176
    %v495 = vpop.f32.mrb[0].mxu0
    %v496 = vadd.f32 %v85, %v495
    %v497 = vpop.f32.mrb[0].mxu0
    %498 = vmatprep.mubr.f32.mxu0 0.0
    %499 = vmatmul.mubr.f32.gmra.mrb[0].mxu0 %v179
    %v500 = vpop.f32.mrb[0].mxu0
    %v501 = vadd.f32 %v85, %v500
    %v502 = vpop.f32.mrb[0].mxu0
    %503 = vmatprep.mubr.f32.mxu0 0.0
    %504 = vmatmul.mubr.f32.gmra.mrb[0].mxu0 %v182
    %v505 = vpop.f32.mrb[0].mxu0
    %v506 = vadd.f32 %v85, %v505
    %v507 = vpop.f32.mrb[0].mxu0
    %508 = vmatprep.mubr.f32.mxu0 0.0
    %509 = vmatmul.mubr.f32.gmra.mrb[0].mxu0 %v185
    %v510 = vpop.f32.mrb[0].mxu0
    %v511 = vadd.f32 %v85, %v510
    %v512 = vpop.f32.mrb[0].mxu0
    %513 = vmatprep.mubr.f32.mxu0 0.0
    %514 = vmatmul.mubr.f32.gmra.mrb[0].mxu0 %v188
    %v515 = vpop.f32.mrb[0].mxu0
    %v516 = vadd.f32 %v85, %v515
    %v517 = vpop.f32.mrb[0].mxu0
    %518 = vmatprep.mubr.f32.mxu0 0.0
    %519 = vmatmul.mubr.f32.gmra.mrb[0].mxu0 %v191
    %v520 = vpop.f32.mrb[0].mxu0
    %v521 = vadd.f32 %v85, %v520
    %v522 = vpop.f32.mrb[0].mxu0
    %523 = vmatprep.mubr.f32.mxu0 0.0
    %524 = vmatmul.mubr.f32.gmra.mrb[0].mxu0 %v194
    %v525 = vpop.f32.mrb[0].mxu0
    %v526 = vadd.f32 %v85, %v525
    %v527 = vpop.f32.mrb[0].mxu0
    %528 = vmatprep.mubr.f32.mxu0 0.0
    %529 = vmatmul.mubr.f32.gmra.mrb[0].mxu0 %v197
    %v530 = vpop.f32.mrb[0].mxu0
    %v531 = vadd.f32 %v85, %v530
    %v532 = vpop.f32.mrb[0].mxu0
    %533 = vmatprep.mubr.f32.mxu0 0.0
    %534 = vmatmul.mubr.f32.gmra.mrb[0].mxu0 %v200
    %v535 = vpop.f32.mrb[0].mxu0
    %v536 = vadd.f32 %v85, %v535
    %v537 = vpop.f32.mrb[0].mxu0
    %538 = vmatprep.mubr.f32.mxu0 0.0
    %539 = vmatmul.mubr.f32.gmra.mrb[0].mxu0 %v203
    %v540 = vpop.f32.mrb[0].mxu0
    %v541 = vadd.f32 %v85, %v540
    %v542 = vpop.f32.mrb[0].mxu0
    %543 = vmatprep.mubr.f32.mxu0 0.0
    %544 = vmatmul.mubr.f32.gmra.mrb[0].mxu0 %v206
    %v545 = vpop.f32.mrb[0].mxu0
    %v546 = vadd.f32 %v85, %v545
    %v547 = vpop.f32.mrb[0].mxu0
    %548 = vmatprep.mubr.f32.mxu0 0.0
    %549 = vmatmul.mubr.f32.gmra.mrb[0].mxu0 %v209
    %v550 = vpop.f32.mrb[0].mxu0
    %v551 = vadd.f32 %v85, %v550
    %v552 = vpop.f32.mrb[0].mxu0
    %553 = vmatprep.mubr.f32.mxu0 0.0
    %554 = vmatmul.mubr.f32.gmra.mrb[0].mxu0 %v212
    %v555 = vpop.f32.mrb[0].mxu0
    %v556 = vadd.f32 %v85, %v555
    %v557 = vpop.f32.mrb[0].mxu0
    %558 = vmatprep.mubr.f32.mxu0 0.0
    %559 = vmatmul.mubr.f32.gmra.mrb[0].mxu0 %v215
    %v560 = vpop.f32.mrb[0].mxu0
    %v561 = vadd.f32 %v85, %v560
    %v562 = vpop.f32.mrb[0].mxu0
    %563 = vmatprep.mubr.f32.mxu0 0.0
    %564 = vmatmul.mubr.f32.gmra.mrb[0].mxu0 %v218
    %v565 = vpop.f32.mrb[0].mxu0
    %v566 = vadd.f32 %v85, %v565
    %v567 = vpop.f32.mrb[0].mxu0
    %568 = vmatprep.mubr.f32.mxu0 0.0
    %569 = vmatmul.mubr.f32.gmra.mrb[0].mxu0 %v221
    %v570 = vpop.f32.mrb[0].mxu0
    %v571 = vadd.f32 %v85, %v570
    %v572 = vpop.f32.mrb[0].mxu0
    %573 = vmatprep.mubr.f32.mxu0 0.0
    %574 = vmatmul.mubr.f32.gmra.mrb[0].mxu0 %v224
    %v575 = vpop.f32.mrb[0].mxu0
    %v576 = vadd.f32 %v85, %v575
    %v577 = vpop.f32.mrb[0].mxu0
    %578 = vmatprep.mubr.f32.mxu0 0.0
    %579 = vmatmul.mubr.f32.gmra.mrb[0].mxu0 %v227
    %v580 = vpop.f32.mrb[0].mxu0
    %v581 = vadd.f32 %v85, %v580
    %v582 = vpop.f32.mrb[0].mxu0
    %583 = vmatprep.mubr.f32.mxu0 0.0
    %584 = vmatmul.mubr.f32.gmra.mrb[0].mxu0 %v230
    %v585 = vpop.f32.mrb[0].mxu0
    %v586 = vadd.f32 %v85, %v585
    %v587 = vpop.f32.mrb[0].mxu0
    %588 = vmatprep.mubr.f32.mxu0 0.0
    %589 = vmatmul.mubr.f32.gmra.mrb[0].mxu0 %v233
    %v590 = vpop.f32.mrb[0].mxu0
    %v591 = vadd.f32 %v85, %v590
    %v592 = vpop.f32.mrb[0].mxu0
    %593 = vmatprep.mubr.f32.mxu0 0.0
    %594 = vmatmul.mubr.f32.gmra.mrb[0].mxu0 %v236
    %v595 = vpop.f32.mrb[0].mxu0
    %v596 = vadd.f32 %v85, %v595
    %v597 = vpop.f32.mrb[0].mxu0
    %598 = vmatprep.mubr.f32.mxu0 0.0
    %599 = vmatmul.mubr.f32.gmra.mrb[0].mxu0 %v239
    %v600 = vpop.f32.mrb[0].mxu0
    %v601 = vadd.f32 %v85, %v600
    %v602 = vpop.f32.mrb[0].mxu0
    %603 = vmatprep.mubr.f32.mxu0 0.0
    %604 = vmatmul.mubr.f32.gmra.mrb[0].mxu0 %v242
    %v605 = vpop.f32.mrb[0].mxu0
    %v606 = vadd.f32 %v85, %v605
    %v607 = vpop.f32.mrb[0].mxu0
    %608 = vmatprep.mubr.f32.mxu0 0.0
    %609 = vmatmul.mubr.f32.gmra.mrb[0].mxu0 %v245
    %v610 = vpop.f32.mrb[0].mxu0
    %v611 = vadd.f32 %v85, %v610
    %v612 = vpop.f32.mrb[0].mxu0
    %613 = vmatprep.mubr.f32.mxu0 0.0
    %614 = vmatmul.mubr.f32.gmra.mrb[0].mxu0 %v248
    %v615 = vpop.f32.mrb[0].mxu0
    %v616 = vadd.f32 %v85, %v615
    %v617 = vpop.f32.mrb[0].mxu0
    %618 = vmatprep.mubr.f32.mxu0 0.0
    %619 = vmatmul.mubr.f32.gmra.mrb[0].mxu0 %v251
    %v620 = vpop.f32.mrb[0].mxu0
    %v621 = vadd.f32 %v85, %v620
    %v622 = vpop.f32.mrb[0].mxu0
    %623 = vmatprep.mubr.f32.mxu0 0.0
    %624 = vmatmul.mubr.f32.gmra.mrb[0].mxu0 %v254
    %v625 = vpop.f32.mrb[0].mxu0
    %v626 = vadd.f32 %v85, %v625
    %v627 = vpop.f32.mrb[0].mxu0
    %628 = vmatprep.mubr.f32.mxu0 0.0
    %629 = vmatmul.mubr.f32.gmra.mrb[0].mxu0 %v257
    %v630 = vpop.f32.mrb[0].mxu0
    %v631 = vadd.f32 %v85, %v630
    %v632 = vpop.f32.mrb[0].mxu0
    %633 = vmatprep.mubr.f32.mxu0 0.0
    %634 = vmatmul.mubr.f32.gmra.mrb[0].mxu0 %v260
    %v635 = vpop.f32.mrb[0].mxu0
    %v636 = vadd.f32 %v85, %v635
    %v637 = vpop.f32.mrb[0].mxu0
    %638 = vmatprep.mubr.f32.mxu0 0.0
    %639 = vmatmul.mubr.f32.gmra.mrb[0].mxu0 %v263
    %v640 = vpop.f32.mrb[0].mxu0
    %v641 = vadd.f32 %v85, %v640
    %v642 = vpop.f32.mrb[0].mxu0
    %643 = vmatprep.mubr.f32.mxu0 0.0
    %644 = vmatmul.mubr.f32.gmra.mrb[0].mxu0 %v266
    %v645 = vpop.f32.mrb[0].mxu0
    %v646 = vadd.f32 %v85, %v645
    %v647 = vpop.f32.mrb[0].mxu0
    %648 = vmatprep.mubr.f32.mxu0 0.0
    %649 = vmatmul.mubr.f32.gmra.mrb[0].mxu0 %v269
    %v650 = vpop.f32.mrb[0].mxu0
    %v651 = vadd.f32 %v85, %v650
    %v652 = vpop.f32.mrb[0].mxu0
    %653 = vmatprep.mubr.f32.mxu0 0.0
    %654 = vmatmul.mubr.f32.gmra.mrb[0].mxu0 %v272
    %v655 = vpop.f32.mrb[0].mxu0
    %v656 = vadd.f32 %v85, %v655
    %v657 = vpop.f32.mrb[0].mxu0
    %658 = vmatprep.mubr.f32.mxu0 0.0
    %659 = vmatmul.mubr.f32.gmra.mrb[0].mxu0 %v275
    %v660 = vpop.f32.mrb[0].mxu0
    %v661 = vadd.f32 %v85, %v660
    %v662 = vpop.f32.mrb[0].mxu0
    %663 = vmatprep.mubr.f32.mxu0 0.0
    %664 = vmatmul.mubr.f32.gmra.mrb[0].mxu0 %v278
    %v665 = vpop.f32.mrb[0].mxu0
    %v666 = vadd.f32 %v85, %v665
    %v667 = vpop.f32.mrb[0].mxu0
    %668 = vdwg.mxu0
    %v669 = vmax.f32 %v351, 0.0
    %v670 = vmax.f32 %v356, 0.0
    %v671 = vmax.f32 %v361, 0.0
    %v672 = vmax.f32 %v366, 0.0
    %v673 = vmax.f32 %v371, 0.0
    %v674 = vmax.f32 %v376, 0.0
    %v675 = vmax.f32 %v381, 0.0
    %v676 = vmax.f32 %v386, 0.0
    %v677 = vmax.f32 %v391, 0.0
    %v678 = vmax.f32 %v396, 0.0
    %v679 = vmax.f32 %v401, 0.0
    %v680 = vmax.f32 %v406, 0.0
    %v681 = vmax.f32 %v411, 0.0
    %v682 = vmax.f32 %v416, 0.0
    %v683 = vmax.f32 %v421, 0.0
    %v684 = vmax.f32 %v426, 0.0
    %v685 = vmax.f32 %v431, 0.0
    %v686 = vmax.f32 %v436, 0.0
    %v687 = vmax.f32 %v441, 0.0
    %v688 = vmax.f32 %v446, 0.0
    %v689 = vmax.f32 %v451, 0.0
    %v690 = vmax.f32 %v456, 0.0
    %v691 = vmax.f32 %v461, 0.0
    %v692 = vmax.f32 %v466, 0.0
    %v693 = vmax.f32 %v471, 0.0
    %v694 = vmax.f32 %v476, 0.0
    %v695 = vmax.f32 %v481, 0.0
    %v696 = vmax.f32 %v486, 0.0
    %v697 = vmax.f32 %v491, 0.0
    %v698 = vmax.f32 %v496, 0.0
    %v699 = vmax.f32 %v501, 0.0
    %v700 = vmax.f32 %v506, 0.0
    %v701 = vmax.f32 %v511, 0.0
    %v702 = vmax.f32 %v516, 0.0
    %v703 = vmax.f32 %v521, 0.0
    %v704 = vmax.f32 %v526, 0.0
    %v705 = vmax.f32 %v531, 0.0
    %v706 = vmax.f32 %v536, 0.0
    %v707 = vmax.f32 %v541, 0.0
    %v708 = vmax.f32 %v546, 0.0
    %v709 = vmax.f32 %v551, 0.0
    %v710 = vmax.f32 %v556, 0.0
    %v711 = vmax.f32 %v561, 0.0
    %v712 = vmax.f32 %v566, 0.0
    %v713 = vmax.f32 %v571, 0.0
    %v714 = vmax.f32 %v576, 0.0
    %v715 = vmax.f32 %v581, 0.0
    %v716 = vmax.f32 %v586, 0.0
    %v717 = vmax.f32 %v591, 0.0
    %v718 = vmax.f32 %v596, 0.0
    %v719 = vmax.f32 %v601, 0.0
    %v720 = vmax.f32 %v606, 0.0
    %v721 = vmax.f32 %v611, 0.0
    %v722 = vmax.f32 %v616, 0.0
    %v723 = vmax.f32 %v621, 0.0
    %v724 = vmax.f32 %v626, 0.0
    %v725 = vmax.f32 %v631, 0.0
    %v726 = vmax.f32 %v636, 0.0
    %v727 = vmax.f32 %v641, 0.0
    %v728 = vmax.f32 %v646, 0.0
    %v729 = vmax.f32 %v651, 0.0
    %v730 = vmax.f32 %v656, 0.0
    %v731 = vmax.f32 %v661, 0.0
    %v732 = vmax.f32 %v666, 0.0
    %733 = vst [vmem:[#allocation2] sm:$0xff] %v669
    %734 = vst [vmem:[#allocation2 + $0x8] sm:$0xff] %v670
    %735 = vst [vmem:[#allocation2 + $0x10] sm:$0xff] %v671
    %736 = vst [vmem:[#allocation2 + $0x18] sm:$0xff] %v672
    %737 = vst [vmem:[#allocation2 + $0x20] sm:$0xff] %v673
    %738 = vst [vmem:[#allocation2 + $0x28] sm:$0xff] %v674
    %739 = vst [vmem:[#allocation2 + $0x30] sm:$0xff] %v675
    %740 = vst [vmem:[#allocation2 + $0x38] sm:$0xff] %v676
    %741 = vst [vmem:[#allocation2 + $0x40] sm:$0xff] %v677
    %742 = vst [vmem:[#allocation2 + $0x48] sm:$0xff] %v678
    %743 = vst [vmem:[#allocation2 + $0x50] sm:$0xff] %v679
    %744 = vst [vmem:[#allocation2 + $0x58] sm:$0xff] %v680
    %745 = vst [vmem:[#allocation2 + $0x60] sm:$0xff] %v681
    %746 = vst [vmem:[#allocation2 + $0x68] sm:$0xff] %v682
    %747 = vst [vmem:[#allocation2 + $0x70] sm:$0xff] %v683
    %748 = vst [vmem:[#allocation2 + $0x78] sm:$0xff] %v684
    %749 = vst [vmem:[#allocation2 + $0x80] sm:$0xff] %v685
    %750 = vst [vmem:[#allocation2 + $0x88] sm:$0xff] %v686
    %751 = vst [vmem:[#allocation2 + $0x90] sm:$0xff] %v687
    %752 = vst [vmem:[#allocation2 + $0x98] sm:$0xff] %v688
    %753 = vst [vmem:[#allocation2 + $0xa0] sm:$0xff] %v689
    %754 = vst [vmem:[#allocation2 + $0xa8] sm:$0xff] %v690
    %755 = vst [vmem:[#allocation2 + $0xb0] sm:$0xff] %v691
    %756 = vst [vmem:[#allocation2 + $0xb8] sm:$0xff] %v692
    %757 = vst [vmem:[#allocation2 + $0xc0] sm:$0xff] %v693
    %758 = vst [vmem:[#allocation2 + $0xc8] sm:$0xff] %v694
    %759 = vst [vmem:[#allocation2 + $0xd0] sm:$0xff] %v695
    %760 = vst [vmem:[#allocation2 + $0xd8] sm:$0xff] %v696
    %761 = vst [vmem:[#allocation2 + $0xe0] sm:$0xff] %v697
    %762 = vst [vmem:[#allocation2 + $0xe8] sm:$0xff] %v698
    %763 = vst [vmem:[#allocation2 + $0xf0] sm:$0xff] %v699
    %764 = vst [vmem:[#allocation2 + $0xf8] sm:$0xff] %v700
    %765 = vst [vmem:[#allocation2 + $0x100] sm:$0xff] %v701
    %766 = vst [vmem:[#allocation2 + $0x108] sm:$0xff] %v702
    %767 = vst [vmem:[#allocation2 + $0x110] sm:$0xff] %v703
    %768 = vst [vmem:[#allocation2 + $0x118] sm:$0xff] %v704
    %769 = vst [vmem:[#allocation2 + $0x120] sm:$0xff] %v705
    %770 = vst [vmem:[#allocation2 + $0x128] sm:$0xff] %v706
    %771 = vst [vmem:[#allocation2 + $0x130] sm:$0xff] %v707
    %772 = vst [vmem:[#allocation2 + $0x138] sm:$0xff] %v708
    %773 = vst [vmem:[#allocation2 + $0x140] sm:$0xff] %v709
    %774 = vst [vmem:[#allocation2 + $0x148] sm:$0xff] %v710
    %775 = vst [vmem:[#allocation2 + $0x150] sm:$0xff] %v711
    %776 = vst [vmem:[#allocation2 + $0x158] sm:$0xff] %v712
    %777 = vst [vmem:[#allocation2 + $0x160] sm:$0xff] %v713
    %778 = vst [vmem:[#allocation2 + $0x168] sm:$0xff] %v714
    %779 = vst [vmem:[#allocation2 + $0x170] sm:$0xff] %v715
    %780 = vst [vmem:[#allocation2 + $0x178] sm:$0xff] %v716
    %781 = vst [vmem:[#allocation2 + $0x180] sm:$0xff] %v717
    %782 = vst [vmem:[#allocation2 + $0x188] sm:$0xff] %v718
    %783 = vst [vmem:[#allocation2 + $0x190] sm:$0xff] %v719
    %784 = vst [vmem:[#allocation2 + $0x198] sm:$0xff] %v720
    %785 = vst [vmem:[#allocation2 + $0x1a0] sm:$0xff] %v721
    %786 = vst [vmem:[#allocation2 + $0x1a8] sm:$0xff] %v722
    %787 = vst [vmem:[#allocation2 + $0x1b0] sm:$0xff] %v723
    %788 = vst [vmem:[#allocation2 + $0x1b8] sm:$0xff] %v724
    %789 = vst [vmem:[#allocation2 + $0x1c0] sm:$0xff] %v725
    %790 = vst [vmem:[#allocation2 + $0x1c8] sm:$0xff] %v726
    %791 = vst [vmem:[#allocation2 + $0x1d0] sm:$0xff] %v727
    %792 = vst [vmem:[#allocation2 + $0x1d8] sm:$0xff] %v728
    %793 = vst [vmem:[#allocation2 + $0x1e0] sm:$0xff] %v729
    %794 = vst [vmem:[#allocation2 + $0x1e8] sm:$0xff] %v730
    %795 = vst [vmem:[#allocation2 + $0x1f0] sm:$0xff] %v731
    %796 = vst [vmem:[#allocation2 + $0x1f8] sm:$0xff] %v732
    // Predicated region
    $region14: #{tpu_custom_call.1} parent=1 // pred_check
      _
    $region15: #{tpu_custom_call.1} parent=1 // pred_check_branch
      %798 = sbr.rel (0) target = $region17
    $region16: #{tpu_custom_call.1} parent=1 // pred_region
      %s800 = ssub.s32 8192, 8192
      %801 = vsyncadd [#allocation3], %s800
      %s802 = sshll.u32 [#allocation2], 4
      %s803 = int_to_ptr.vmem [resolvable:$true] %s802
      %808 = dma.vmem_to_hbm [thread:$0]  %s803, 8192, %s3, [#allocation3], 128, 128, 8
    $region17: #{tpu_custom_call.1} parent=1 // pred_fallthru
      _
    // Predicated region
    $region18: #{tpu_custom_call.1} parent=1 // pred_check
      _
    $region19: #{tpu_custom_call.1} parent=1 // pred_check_branch
      %810 = sbr.rel (0) target = $region21
    $region20: #{tpu_custom_call.1} parent=1 // pred_region
      %811 = dma.done [#allocation3], 8192
    $region21: #{tpu_custom_call.1} parent=1 // pred_fallthru
      _
    %812 = vsyncpa [#allocation3], 1

</llo_original>
